<compile_context>
chip_gen: v5e
topology: v5e:2x2
jax: 0.10.0
libtpu: 0.0.40
codegen_flags: <defaults>
</compile_context>

<pallas_src>
import functools

import jax
import jax.numpy as jnp
from jax import lax
from jax.experimental import pallas as pl
from jax.experimental.pallas import tpu as pltpu


def _round_up(x, m):
    return ((x + m - 1) // m) * m


def _basesnet_kernel(x_ref, w1_ref, b1_ref, w2_ref, b2_ref, w3_ref, b3_ref, o_ref,
                     *, sub_t):
    # x_ref:  (1, F, T)  f32   pixel tile, channels on sublanes, pixels on lanes
    # w*_ref: (out, in)  bf16  full weight matrices (PyTorch Conv2d orientation)
    # b*_ref: (out, 1)   f32   biases, broadcast along the lane (pixel) axis
    # o_ref:  (1, LK, T) f32
    w1 = w1_ref[...]
    w2 = w2_ref[...]
    w3 = w3_ref[...]
    b1 = b1_ref[...]
    b2 = b2_ref[...]
    b3 = b3_ref[...]

    n_sub = o_ref.shape[2] // sub_t

    def body(i, carry):
        off = pl.multiple_of(i * sub_t, sub_t)
        x = x_ref[0, :, pl.ds(off, sub_t)].astype(jnp.bfloat16)          # (F, sub_t)
        h = jnp.dot(w1, x, preferred_element_type=jnp.float32) + b1       # (D, sub_t) f32
        h = jnp.maximum(h, 0.0).astype(jnp.bfloat16)
        h = jnp.dot(w2, h, preferred_element_type=jnp.float32) + b2
        h = jnp.maximum(h, 0.0).astype(jnp.bfloat16)
        h = jnp.dot(w3, h, preferred_element_type=jnp.float32) + b3
        o_ref[0, :, pl.ds(off, sub_t)] = jnp.maximum(h, 0.0).astype(o_ref.dtype)
        return carry

    lax.fori_loop(0, n_sub, body, 0, unroll=True)


@functools.partial(jax.jit, static_argnames=("tile_t", "sub_tile"))
def basesnet_forward(x_nchw, params, tile_t=8192, sub_tile=512):
    """x_nchw: (N, F, H, W) float32.  Returns (N, L*K, H, W) float32."""
    w1, b1, w2, b2, w3, b3 = params            # w*: (out, in) f32, b*: (out, 1) f32
    N, F, H, W = x_nchw.shape
    D = w1.shape[0]
    LK = w3.shape[0]
    HW = H * W

    # Cast weights to bf16 once (MXU-native); biases stay f32 (added post-accumulation).
    w1b = w1.astype(jnp.bfloat16)
    w2b = w2.astype(jnp.bfloat16)
    w3b = w3.astype(jnp.bfloat16)

    # NCHW -> (N, F, H*W): pure reshape, no data movement.
    x3d = x_nchw.reshape(N, F, HW)

    # Pixel tile on the lane axis: multiple of 128 (sub-tile aligned), capped at image size.
    hw_pad128 = _round_up(HW, 128)
    T = min(_round_up(int(tile_t), 256), hw_pad128)
    ST = min(int(sub_tile), T)            # ST is a multiple of 128 (T is)
    T = _round_up(T, ST)
    # v7x megacore guard: keep >= 2 parallel programs when N == 1.
    if N == 1 and T >= hw_pad128 and hw_pad128 > ST:
        T = max(ST, _round_up((hw_pad128 + 1) // 2, ST))

    HW_pad = _round_up(HW, T)
    if HW_pad != HW:
        # Zero-pad the pixel axis; padded columns (= relu(bias)) are sliced off below.
        x3d = jnp.pad(x3d, ((0, 0), (0, 0), (0, HW_pad - HW)))

    grid = (N, HW_pad // T)

    # VMEM budget including layout padding:
    #   x block: F=4 sublane-pads to 8; out block: LK sublane-pads to mult of 8;
    #   weight/bias blocks lane-pad to 128.  Everything double-buffered by Pallas.
    f32, bf16 = 4, 2
    F_pad = _round_up(F, 8)
    LK_pad = _round_up(LK, 8)
    D_pad8 = _round_up(D, 8)
    vmem_need = (
        2 * F_pad * T * f32                      # x block (double buffered)
        + 2 * LK_pad * T * f32                   # out block (double buffered)
        + 2 * (D * 128 + D * 128 + LK * 128) * bf16      # bf16 weights, lane-padded
        + 2 * (D_pad8 * 128 * 2 + LK_pad * 128) * f32    # f32 biases, lane-padded
        + 4 * D_pad8 * ST * f32                  # in-loop intermediates / spill slack
        + (2 << 20)                              # general slack
    )
    vmem_limit = int(min(max(vmem_need, 8 << 20), 32 << 20))

    out3d = pl.pallas_call(
        functools.partial(_basesnet_kernel, sub_t=ST),
        out_shape=jax.ShapeDtypeStruct((N, LK, HW_pad), jnp.float32),
        grid=grid,
        in_specs=[
            pl.BlockSpec((1, F, T), lambda n, t: (n, 0, t)),   # pixel tile
            pl.BlockSpec((D, F), lambda n, t: (0, 0)),         # w1 (resident, bf16)
            pl.BlockSpec((D, 1), lambda n, t: (0, 0)),         # b1
            pl.BlockSpec((D, D), lambda n, t: (0, 0)),         # w2 (resident, bf16)
            pl.BlockSpec((D, 1), lambda n, t: (0, 0)),         # b2
            pl.BlockSpec((LK, D), lambda n, t: (0, 0)),        # w3 (resident, bf16)
            pl.BlockSpec((LK, 1), lambda n, t: (0, 0)),        # b3
        ],
        out_specs=pl.BlockSpec((1, LK, T), lambda n, t: (n, 0, t)),
        compiler_params=pltpu.CompilerParams(
            dimension_semantics=("parallel", "parallel"),
            vmem_limit_bytes=vmem_limit),
    )(x3d, w1b, b1, w2b, b2, w3b, b3)

    out3d = out3d[:, :, :HW]
    return out3d.reshape(N, LK, H, W)


def init_params(key, F, D, LK):
    """Deterministic synthetic params in PyTorch Conv2d orientation:
    weights (out, in) (the squeezed (out, in, 1, 1)), biases (out, 1)."""
    k1, k2, k3, k4, k5, k6 = jax.random.split(key, 6)
    w1 = jax.random.normal(k1, (D, F), jnp.float32) * 0.1
    b1 = jax.random.normal(k2, (D, 1), jnp.float32) * 0.01
    w2 = jax.random.normal(k3, (D, D), jnp.float32) * 0.1
    b2 = jax.random.normal(k4, (D, 1), jnp.float32) * 0.01
    w3 = jax.random.normal(k5, (LK, D), jnp.float32) * 0.1
    b3 = jax.random.normal(k6, (LK, 1), jnp.float32) * 0.01
    return (w1, b1, w2, b2, w3, b3)


def reference_forward(x_nchw, params):
    """Pure-JAX f32 reference of the 1x1-conv stack (sanity check)."""
    w1, b1, w2, b2, w3, b3 = params
    N, F, H, W = x_nchw.shape
    x = x_nchw.reshape(N, F, H * W)
    h = jnp.maximum(jnp.einsum("of,nfp->nop", w1, x) + b1[None], 0.0)
    h = jnp.maximum(jnp.einsum("od,ndp->nop", w2, h) + b2[None], 0.0)
    h = jnp.maximum(jnp.einsum("od,ndp->nop", w3, h) + b3[None], 0.0)
    return h.reshape(N, -1, H, W)


if __name__ == "__main__":
    # opt: F=4, fc_dimension=32, num_of_fc=2, L=4, K=8, with_batchnorm=False
    F, D, L, K = 4, 32, 4, 8
    LK = L * K
    N, H, W = 2, 16, 16

    key = jax.random.PRNGKey(0)
    kx, kp = jax.random.split(key)
    x = jax.random.normal(kx, (N, F, H, W), jnp.float32)
    params = init_params(kp, F, D, LK)

    out = basesnet_forward(x, params)
    out = jax.block_until_ready(out)

    ref = reference_forward(x, params)
    assert out.shape == (N, LK, H, W)
    # bf16 matmul operands (f32 accumulation) -> loosened tolerance vs. f32 reference.
    assert jnp.allclose(out, ref, atol=3e-2, rtol=3e-2), float(
        jnp.max(jnp.abs(out - ref)))

    # TODO(synk): with_batchnorm=True branch (BatchNorm2d) not implemented in-kernel.
    print("KERNEL_OK")
</pallas_src>

<mosaic_0001>
module attributes {stable_mosaic.version = 11 : i64} {
  func.func @_basesnet_kernel(%arg0: i32, %arg1: i32, %arg2: memref<1x4x256xf32, #tpu.memory_space<vmem>>, %arg3: memref<32x4xbf16, #tpu.memory_space<vmem>>, %arg4: memref<32x1xf32, #tpu.memory_space<vmem>>, %arg5: memref<32x32xbf16, #tpu.memory_space<vmem>>, %arg6: memref<32x1xf32, #tpu.memory_space<vmem>>, %arg7: memref<32x32xbf16, #tpu.memory_space<vmem>>, %arg8: memref<32x1xf32, #tpu.memory_space<vmem>>, %arg9: memref<1x32x256xf32, #tpu.memory_space<vmem>>) attributes {dimension_semantics = [#tpu.dimension_semantics<parallel>, #tpu.dimension_semantics<parallel>], iteration_bounds = array<i64: 2, 1>, scalar_prefetch = 0 : i64, scratch_operands = 0 : i64, tpu.core_type = #tpu.core_type<tc>, window_params = [{transform_indices = @transform_0, window_bounds = array<i64: 1, 4, 256>}, {pipeline_mode = #tpu.pipeline_mode<synchronous>, transform_indices = @transform_1, window_bounds = array<i64: 32, 4>}, {pipeline_mode = #tpu.pipeline_mode<synchronous>, transform_indices = @transform_2, window_bounds = array<i64: 32, 1>}, {pipeline_mode = #tpu.pipeline_mode<synchronous>, transform_indices = @transform_3, window_bounds = array<i64: 32, 32>}, {pipeline_mode = #tpu.pipeline_mode<synchronous>, transform_indices = @transform_4, window_bounds = array<i64: 32, 1>}, {pipeline_mode = #tpu.pipeline_mode<synchronous>, transform_indices = @transform_5, window_bounds = array<i64: 32, 32>}, {pipeline_mode = #tpu.pipeline_mode<synchronous>, transform_indices = @transform_6, window_bounds = array<i64: 32, 1>}, {transform_indices = @transform_7, window_bounds = array<i64: 1, 32, 256>}]} {
    %c0 = arith.constant 0 : index
    %c0_0 = arith.constant 0 : index
    %0 = vector.load %arg3[%c0, %c0_0] : memref<32x4xbf16, #tpu.memory_space<vmem>>, vector<32x4xbf16>
    %c0_1 = arith.constant 0 : index
    %c0_2 = arith.constant 0 : index
    %1 = vector.load %arg5[%c0_1, %c0_2] : memref<32x32xbf16, #tpu.memory_space<vmem>>, vector<32x32xbf16>
    %c0_3 = arith.constant 0 : index
    %c0_4 = arith.constant 0 : index
    %2 = vector.load %arg7[%c0_3, %c0_4] : memref<32x32xbf16, #tpu.memory_space<vmem>>, vector<32x32xbf16>
    %c0_5 = arith.constant 0 : index
    %c0_6 = arith.constant 0 : index
    %3 = vector.load %arg4[%c0_5, %c0_6] : memref<32x1xf32, #tpu.memory_space<vmem>>, vector<32x1xf32>
    %c0_7 = arith.constant 0 : index
    %c0_8 = arith.constant 0 : index
    %4 = vector.load %arg6[%c0_7, %c0_8] : memref<32x1xf32, #tpu.memory_space<vmem>>, vector<32x1xf32>
    %c0_9 = arith.constant 0 : index
    %c0_10 = arith.constant 0 : index
    %5 = vector.load %arg8[%c0_9, %c0_10] : memref<32x1xf32, #tpu.memory_space<vmem>>, vector<32x1xf32>
    %c0_i32 = arith.constant 0 : i32
    %c256_i32 = arith.constant 256 : i32
    %6 = arith.muli %c0_i32, %c256_i32 : i32
    %7 = tpu.assume_multiple %6, 256 : i32
    %c0_11 = arith.constant 0 : index
    %c0_12 = arith.constant 0 : index
    %8 = arith.index_cast %7 : i32 to index
    %9 = vector.load %arg2[%c0_11, %c0_12, %8] : memref<1x4x256xf32, #tpu.memory_space<vmem>>, vector<1x4x256xf32>
    %10 = vector.shape_cast %9 : vector<1x4x256xf32> to vector<4x256xf32>
    %11 = arith.truncf %10 : vector<4x256xf32> to vector<4x256xbf16>
    %cst = arith.constant dense<0.000000e+00> : vector<32x256xf32>
    %12 = tpu.matmul %0, %11, %cst {dimension_numbers = #tpu.dot_dimension_numbers<[1], [0], [0], [1], [0, 0, 1, 1], [], []>} : vector<32x4xbf16>, vector<4x256xbf16>, vector<32x256xf32> -> vector<32x256xf32>
    %13 = vector.broadcast %3 : vector<32x1xf32> to vector<32x256xf32>
    %14 = arith.addf %12, %13 : vector<32x256xf32>
    %cst_13 = arith.constant 0.000000e+00 : f32
    %15 = vector.broadcast %cst_13 : f32 to vector<32x256xf32>
    %16 = arith.maximumf %14, %15 : vector<32x256xf32>
    %17 = arith.truncf %16 : vector<32x256xf32> to vector<32x256xbf16>
    %cst_14 = arith.constant dense<0.000000e+00> : vector<32x256xf32>
    %18 = tpu.matmul %1, %17, %cst_14 {dimension_numbers = #tpu.dot_dimension_numbers<[1], [0], [0], [1], [0, 0, 1, 1], [], []>} : vector<32x32xbf16>, vector<32x256xbf16>, vector<32x256xf32> -> vector<32x256xf32>
    %19 = vector.broadcast %4 : vector<32x1xf32> to vector<32x256xf32>
    %20 = arith.addf %18, %19 : vector<32x256xf32>
    %cst_15 = arith.constant 0.000000e+00 : f32
    %21 = vector.broadcast %cst_15 : f32 to vector<32x256xf32>
    %22 = arith.maximumf %20, %21 : vector<32x256xf32>
    %23 = arith.truncf %22 : vector<32x256xf32> to vector<32x256xbf16>
    %cst_16 = arith.constant dense<0.000000e+00> : vector<32x256xf32>
    %24 = tpu.matmul %2, %23, %cst_16 {dimension_numbers = #tpu.dot_dimension_numbers<[1], [0], [0], [1], [0, 0, 1, 1], [], []>} : vector<32x32xbf16>, vector<32x256xbf16>, vector<32x256xf32> -> vector<32x256xf32>
    %25 = vector.broadcast %5 : vector<32x1xf32> to vector<32x256xf32>
    %26 = arith.addf %24, %25 : vector<32x256xf32>
    %cst_17 = arith.constant 0.000000e+00 : f32
    %27 = vector.broadcast %cst_17 : f32 to vector<32x256xf32>
    %28 = arith.maximumf %26, %27 : vector<32x256xf32>
    %c0_18 = arith.constant 0 : index
    %c0_19 = arith.constant 0 : index
    %29 = arith.index_cast %7 : i32 to index
    %30 = vector.load %arg9[%c0_18, %c0_19, %29] : memref<1x32x256xf32, #tpu.memory_space<vmem>>, vector<1x32x256xf32>
    %31 = vector.shape_cast %30 : vector<1x32x256xf32> to vector<32x256xf32>
    %32 = vector.shape_cast %28 : vector<32x256xf32> to vector<1x32x256xf32>
    tpu.vector_store %arg9[%c0_18, %c0_19, %29], %32 {strides = array<i32>} : memref<1x32x256xf32, #tpu.memory_space<vmem>>, vector<1x32x256xf32>,
    %c1_i32 = arith.constant 1 : i32
    return
  }
  func.func @transform_0(%arg0: i32, %arg1: i32) -> (i32, i32, i32) {
    %c0_i32 = arith.constant 0 : i32
    %c0_i32_0 = arith.constant 0 : i32
    return %arg0, %c0_i32, %arg1 : i32, i32, i32
  }
  func.func @transform_1(%arg0: i32, %arg1: i32) -> (i32, i32) {
    %c0_i32 = arith.constant 0 : i32
    %c0_i32_0 = arith.constant 0 : i32
    %c0_i32_1 = arith.constant 0 : i32
    return %c0_i32, %c0_i32_0 : i32, i32
  }
  func.func @transform_2(%arg0: i32, %arg1: i32) -> (i32, i32) {
    %c0_i32 = arith.constant 0 : i32
    %c0_i32_0 = arith.constant 0 : i32
    %c0_i32_1 = arith.constant 0 : i32
    return %c0_i32, %c0_i32_0 : i32, i32
  }
  func.func @transform_3(%arg0: i32, %arg1: i32) -> (i32, i32) {
    %c0_i32 = arith.constant 0 : i32
    %c0_i32_0 = arith.constant 0 : i32
    %c0_i32_1 = arith.constant 0 : i32
    return %c0_i32, %c0_i32_0 : i32, i32
  }
  func.func @transform_4(%arg0: i32, %arg1: i32) -> (i32, i32) {
    %c0_i32 = arith.constant 0 : i32
    %c0_i32_0 = arith.constant 0 : i32
    %c0_i32_1 = arith.constant 0 : i32
    return %c0_i32, %c0_i32_0 : i32, i32
  }
  func.func @transform_5(%arg0: i32, %arg1: i32) -> (i32, i32) {
    %c0_i32 = arith.constant 0 : i32
    %c0_i32_0 = arith.constant 0 : i32
    %c0_i32_1 = arith.constant 0 : i32
    return %c0_i32, %c0_i32_0 : i32, i32
  }
  func.func @transform_6(%arg0: i32, %arg1: i32) -> (i32, i32) {
    %c0_i32 = arith.constant 0 : i32
    %c0_i32_0 = arith.constant 0 : i32
    %c0_i32_1 = arith.constant 0 : i32
    return %c0_i32, %c0_i32_0 : i32, i32
  }
  func.func @transform_7(%arg0: i32, %arg1: i32) -> (i32, i32, i32) {
    %c0_i32 = arith.constant 0 : i32
    %c0_i32_0 = arith.constant 0 : i32
    return %arg0, %c0_i32, %arg1 : i32, i32, i32
  }
}

</mosaic_0001>

<llo_original>
// kernel: basesnet_forward.1
$region0: #{basesnet_forward.1}
  #allocation0 [shape = 'u32[]', space=smem, size = 0x4, offset = 0x4, fixed_abs, tag = 'smem constant byte address 0x4 - core index']
  #allocation1 [shape = 'u32[72,128]{1,0:T(1,128)}', space=vmem, size = 0x9000, scoped, tag = 'internal scratch']
  %s0 = inlined_call_operand.vmem [shape: f32[2,4,256], index: 0, kind: input, shape index: {}]
  %s1 = inlined_call_operand.vmem [shape: bf16[32,4], index: 1, kind: input, shape index: {}]
  %s2 = inlined_call_operand.vmem [shape: f32[32,1], index: 2, kind: input, shape index: {}]
  %s3 = inlined_call_operand.vmem [shape: bf16[32,32], index: 3, kind: input, shape index: {}]
  %s4 = inlined_call_operand.vmem [shape: f32[32,1], index: 4, kind: input, shape index: {}]
  %s5 = inlined_call_operand.vmem [shape: bf16[32,32], index: 5, kind: input, shape index: {}]
  %s6 = inlined_call_operand.vmem [shape: f32[32,1], index: 6, kind: input, shape index: {}]
  %s7 = inlined_call_operand.vmem [shape: f32[2,32,256], index: 7, kind: output, shape index: {}]
  %s8 = sld [smem:[#allocation0]]
  $region61: #{basesnet_forward.1} parent=0
    _
  %s10 = ssub.s32 1, %s8
  %s11 = scalar_select 0, %s10, %s8
  loop: start=0, step=1, limit=4
  $region2: #{basesnet_forward.1} parent=0 // loop_pre_header
    _
  $region3: #{basesnet_forward.1} parent=0 // loop_header
    %s13 = sphi 0, %s17
    %p14 = scmp.ge.s32.totalorder %s13, 4
    %s20 = sphi 0, %s32
    %s21 = sphi 0, %s28
    %s22 = sphi 0, %s20
    %s23 = sphi 0, %s21
    %s24 = sphi 0, %s22
    %s25 = sphi 0, %s23
    %s37 = sphi 0, %s39
    %s40 = sphi 0, %s37
    %s41 = sphi 0, %s40
    %s57 = sphi 0, %s41
    %s61 = sphi 0, %s61
    %s63 = sphi 0, %s61
    %s64 = sphi 0, %s63
    %s78 = sphi 0, %s64
    %s82 = sphi 0, %s82
    %s84 = sphi 0, %s82
    %s85 = sphi 0, %s84
    %s99 = sphi 0, %s85
    %s103 = sphi 0, %s103
    %s105 = sphi 0, %s103
    %s106 = sphi 0, %s105
    %s120 = sphi 0, %s106
    %s124 = sphi 0, %s124
    %s126 = sphi 0, %s124
    %s127 = sphi 0, %s126
    %s141 = sphi 0, %s127
    %s145 = sphi 0, %s145
    %s147 = sphi 0, %s145
    %s148 = sphi 0, %s147
    %s162 = sphi 0, %s148
    %s166 = sphi 0, %s166
    %s168 = sphi 0, %s166
    %s169 = sphi 0, %s168
    %s183 = sphi 0, %s169
    %s191 = sphi 0, %s193
    %s194 = sphi 0, %s191
    %s195 = sphi 0, %s194
    %s211 = sphi 0, %s195
  $region4: #{basesnet_forward.1} parent=0 // loop_header_branch
    %16 = sbr.rel (%p14) target = $region8
  $region5: #{basesnet_forward.1} parent=0 // loop_body
    %s18 = ssub.s32 %s13, 1
    %s19 = ssub.s32 %s13, 2
    %s26 = sadd.s32 1, %s21
    %p27 = scmp.ge.s32.totalorder %s26, 1
    %s28 = scalar_select %p27, 0, %s26
    %s29 = sadd.s32 1, %s20
    %s30 = scalar_select %p27, %s29, %s20
    %p31 = scmp.ge.s32.totalorder %s30, 2
    %s32 = scalar_select %p31, 0, %s30
    %s33 = ssub.s32 %s20, %s32
    %s34 = ssub.s32 %s21, %s28
    %s35 = sor.u32 %s33, %s34
    %p36 = scmp.eq.s32.totalorder %s35, 0
    %s38 = sadd.s32 %s37, 1
    %s39 = scalar_select %p36, %s37, %s38
    %p42 = pneg %p36
    %p43 = scmp.eq.s32.totalorder %s13, 1
    %p44 = por %p42, %p43
    %p45 = scmp.ne.s32.totalorder %s37, %s40
    %p46 = scmp.eq.s32.totalorder %s13, 0
    %p47 = por %p45, %p46
    %p48 = scmp.ne.s32.totalorder %s37, %s40
    %p49 = scmp.eq.s32.totalorder %s18, 1
    %p50 = por %p48, %p49
    %p51 = scmp.ne.s32.totalorder %s40, %s41
    %p52 = scmp.eq.s32.totalorder %s18, 0
    %p53 = por %p51, %p52
    %p54 = scmp.ne.s32.totalorder %s40, %s41
    %p55 = scmp.eq.s32.totalorder %s19, 1
    %p56 = por %p54, %p55
    %p58 = scmp.ne.s32.totalorder %s41, %s57
    %p59 = scmp.eq.s32.totalorder %s19, 0
    %p60 = por %p58, %p59
    %s62 = sadd.s32 %s61, 1
    %p65 = scmp.eq.s32.totalorder %s13, 1
    %p66 = scmp.ne.s32.totalorder %s61, %s63
    %p67 = scmp.eq.s32.totalorder %s13, 0
    %p68 = por %p66, %p67
    %p69 = scmp.ne.s32.totalorder %s61, %s63
    %p70 = scmp.eq.s32.totalorder %s18, 1
    %p71 = por %p69, %p70
    %p72 = scmp.ne.s32.totalorder %s63, %s64
    %p73 = scmp.eq.s32.totalorder %s18, 0
    %p74 = por %p72, %p73
    %p75 = scmp.ne.s32.totalorder %s63, %s64
    %p76 = scmp.eq.s32.totalorder %s19, 1
    %p77 = por %p75, %p76
    %p79 = scmp.ne.s32.totalorder %s64, %s78
    %p80 = scmp.eq.s32.totalorder %s19, 0
    %p81 = por %p79, %p80
    %s83 = sadd.s32 %s82, 1
    %p86 = scmp.eq.s32.totalorder %s13, 1
    %p87 = scmp.ne.s32.totalorder %s82, %s84
    %p88 = scmp.eq.s32.totalorder %s13, 0
    %p89 = por %p87, %p88
    %p90 = scmp.ne.s32.totalorder %s82, %s84
    %p91 = scmp.eq.s32.totalorder %s18, 1
    %p92 = por %p90, %p91
    %p93 = scmp.ne.s32.totalorder %s84, %s85
    %p94 = scmp.eq.s32.totalorder %s18, 0
    %p95 = por %p93, %p94
    %p96 = scmp.ne.s32.totalorder %s84, %s85
    %p97 = scmp.eq.s32.totalorder %s19, 1
    %p98 = por %p96, %p97
    %p100 = scmp.ne.s32.totalorder %s85, %s99
    %p101 = scmp.eq.s32.totalorder %s19, 0
    %p102 = por %p100, %p101
    %s104 = sadd.s32 %s103, 1
    %p107 = scmp.eq.s32.totalorder %s13, 1
    %p108 = scmp.ne.s32.totalorder %s103, %s105
    %p109 = scmp.eq.s32.totalorder %s13, 0
    %p110 = por %p108, %p109
    %p111 = scmp.ne.s32.totalorder %s103, %s105
    %p112 = scmp.eq.s32.totalorder %s18, 1
    %p113 = por %p111, %p112
    %p114 = scmp.ne.s32.totalorder %s105, %s106
    %p115 = scmp.eq.s32.totalorder %s18, 0
    %p116 = por %p114, %p115
    %p117 = scmp.ne.s32.totalorder %s105, %s106
    %p118 = scmp.eq.s32.totalorder %s19, 1
    %p119 = por %p117, %p118
    %p121 = scmp.ne.s32.totalorder %s106, %s120
    %p122 = scmp.eq.s32.totalorder %s19, 0
    %p123 = por %p121, %p122
    %s125 = sadd.s32 %s124, 1
    %p128 = scmp.eq.s32.totalorder %s13, 1
    %p129 = scmp.ne.s32.totalorder %s124, %s126
    %p130 = scmp.eq.s32.totalorder %s13, 0
    %p131 = por %p129, %p130
    %p132 = scmp.ne.s32.totalorder %s124, %s126
    %p133 = scmp.eq.s32.totalorder %s18, 1
    %p134 = por %p132, %p133
    %p135 = scmp.ne.s32.totalorder %s126, %s127
    %p136 = scmp.eq.s32.totalorder %s18, 0
    %p137 = por %p135, %p136
    %p138 = scmp.ne.s32.totalorder %s126, %s127
    %p139 = scmp.eq.s32.totalorder %s19, 1
    %p140 = por %p138, %p139
    %p142 = scmp.ne.s32.totalorder %s127, %s141
    %p143 = scmp.eq.s32.totalorder %s19, 0
    %p144 = por %p142, %p143
    %s146 = sadd.s32 %s145, 1
    %p149 = scmp.eq.s32.totalorder %s13, 1
    %p150 = scmp.ne.s32.totalorder %s145, %s147
    %p151 = scmp.eq.s32.totalorder %s13, 0
    %p152 = por %p150, %p151
    %p153 = scmp.ne.s32.totalorder %s145, %s147
    %p154 = scmp.eq.s32.totalorder %s18, 1
    %p155 = por %p153, %p154
    %p156 = scmp.ne.s32.totalorder %s147, %s148
    %p157 = scmp.eq.s32.totalorder %s18, 0
    %p158 = por %p156, %p157
    %p159 = scmp.ne.s32.totalorder %s147, %s148
    %p160 = scmp.eq.s32.totalorder %s19, 1
    %p161 = por %p159, %p160
    %p163 = scmp.ne.s32.totalorder %s148, %s162
    %p164 = scmp.eq.s32.totalorder %s19, 0
    %p165 = por %p163, %p164
    %s167 = sadd.s32 %s166, 1
    %p170 = scmp.eq.s32.totalorder %s13, 1
    %p171 = scmp.ne.s32.totalorder %s166, %s168
    %p172 = scmp.eq.s32.totalorder %s13, 0
    %p173 = por %p171, %p172
    %p174 = scmp.ne.s32.totalorder %s166, %s168
    %p175 = scmp.eq.s32.totalorder %s18, 1
    %p176 = por %p174, %p175
    %p177 = scmp.ne.s32.totalorder %s168, %s169
    %p178 = scmp.eq.s32.totalorder %s18, 0
    %p179 = por %p177, %p178
    %p180 = scmp.ne.s32.totalorder %s168, %s169
    %p181 = scmp.eq.s32.totalorder %s19, 1
    %p182 = por %p180, %p181
    %p184 = scmp.ne.s32.totalorder %s169, %s183
    %p185 = scmp.eq.s32.totalorder %s19, 0
    %p186 = por %p184, %p185
    %s187 = ssub.s32 %s20, %s32
    %s188 = ssub.s32 %s21, %s28
    %s189 = sor.u32 %s187, %s188
    %p190 = scmp.eq.s32.totalorder %s189, 0
    %s192 = sadd.s32 %s191, 1
    %s193 = scalar_select %p190, %s191, %s192
    %p196 = pneg %p190
    %p197 = scmp.eq.s32.totalorder %s13, 1
    %p198 = por %p196, %p197
    %p199 = scmp.ne.s32.totalorder %s191, %s194
    %p200 = scmp.eq.s32.totalorder %s13, 0
    %p201 = por %p199, %p200
    %p202 = scmp.ne.s32.totalorder %s191, %s194
    %p203 = scmp.eq.s32.totalorder %s18, 1
    %p204 = por %p202, %p203
    %p205 = scmp.ne.s32.totalorder %s194, %s195
    %p206 = scmp.eq.s32.totalorder %s18, 0
    %p207 = por %p205, %p206
    %p208 = scmp.ne.s32.totalorder %s194, %s195
    %p209 = scmp.eq.s32.totalorder %s19, 1
    %p210 = por %p208, %p209
    %p212 = scmp.ne.s32.totalorder %s195, %s211
    %p213 = scmp.eq.s32.totalorder %s19, 0
    %p214 = por %p212, %p213
    %p215 = scmp.le.s32.totalorder 1, %s13
    %p216 = scmp.lt.s32.totalorder %s13, 3
    %p217 = pnand %p215, %p216
    %p218 = pneg %p217
    // Predicated region
    $region9: #{basesnet_forward.1} parent=5 // pred_check
      _
    $region10: #{basesnet_forward.1} parent=5 // pred_check_branch
      %220 = sbr.rel (%p217) target = $region12
    $region11: #{basesnet_forward.1} parent=5 // pred_region
      %s221 = ssub.s32 %s13, 1
      // Predicated region
      $region13: #{basesnet_forward.1} parent=11 // pred_check
        %p222 = pneg %p74
      $region14: #{basesnet_forward.1} parent=11 // pred_check_branch
        %224 = sbr.rel (%p222) target = $region16
      $region15: #{basesnet_forward.1} parent=11 // pred_region
        _
      $region16: #{basesnet_forward.1} parent=11 // pred_fallthru
        _
      // Predicated region
      $region17: #{basesnet_forward.1} parent=11 // pred_check
        %p225 = pneg %p95
      $region18: #{basesnet_forward.1} parent=11 // pred_check_branch
        %227 = sbr.rel (%p225) target = $region20
      $region19: #{basesnet_forward.1} parent=11 // pred_region
        _
      $region20: #{basesnet_forward.1} parent=11 // pred_fallthru
        _
      // Predicated region
      $region21: #{basesnet_forward.1} parent=11 // pred_check
        %p228 = pneg %p116
      $region22: #{basesnet_forward.1} parent=11 // pred_check_branch
        %230 = sbr.rel (%p228) target = $region24
      $region23: #{basesnet_forward.1} parent=11 // pred_region
        _
      $region24: #{basesnet_forward.1} parent=11 // pred_fallthru
        _
      // Predicated region
      $region25: #{basesnet_forward.1} parent=11 // pred_check
        %p231 = pneg %p137
      $region26: #{basesnet_forward.1} parent=11 // pred_check_branch
        %233 = sbr.rel (%p231) target = $region28
      $region27: #{basesnet_forward.1} parent=11 // pred_region
        _
      $region28: #{basesnet_forward.1} parent=11 // pred_fallthru
        _
      // Predicated region
      $region29: #{basesnet_forward.1} parent=11 // pred_check
        %p234 = pneg %p158
      $region30: #{basesnet_forward.1} parent=11 // pred_check_branch
        %236 = sbr.rel (%p234) target = $region32
      $region31: #{basesnet_forward.1} parent=11 // pred_region
        _
      $region32: #{basesnet_forward.1} parent=11 // pred_fallthru
        _
      // Predicated region
      $region33: #{basesnet_forward.1} parent=11 // pred_check
        %p237 = pneg %p179
      $region34: #{basesnet_forward.1} parent=11 // pred_check_branch
        %239 = sbr.rel (%p237) target = $region36
      $region35: #{basesnet_forward.1} parent=11 // pred_region
        _
      $region36: #{basesnet_forward.1} parent=11 // pred_fallthru
        _
    $region12: #{basesnet_forward.1} parent=5 // pred_fallthru
      _
    %p240 = scmp.lt.s32.totalorder %s13, 2
    // Predicated region
    $region37: #{basesnet_forward.1} parent=5 // pred_check
      %p241 = pneg %p240
    $region38: #{basesnet_forward.1} parent=5 // pred_check_branch
      %243 = sbr.rel (%p241) target = $region40
    $region39: #{basesnet_forward.1} parent=5 // pred_region
      // Predicated region
      $region41: #{basesnet_forward.1} parent=39 // pred_check
        %p244 = pneg %p47
      $region42: #{basesnet_forward.1} parent=39 // pred_check_branch
        %246 = sbr.rel (%p244) target = $region44
      $region43: #{basesnet_forward.1} parent=39 // pred_region
        %s247 = smul.u32 2, %s21
        %p248 = scmp.lt.s32.totalorder %s20, 1
        %s249 = scalar_select %p248, %s20, 1
        %p250 = scmp.lt.s32.totalorder %s247, 1
        %s251 = scalar_select %p250, %s247, 1
        %s252 = smul.addr %s249, 2
        %s253 = sadd.s32 %s251, %s252
        %s254 = smul.addr %s253, 4
        %s255 = scalar_lea.vmem %s0, %s254
        %s256 = smul.u32 2, %s21
      $region44: #{basesnet_forward.1} parent=39 // pred_fallthru
        _
    $region40: #{basesnet_forward.1} parent=5 // pred_fallthru
      _
    %p257 = scmp.le.s32.totalorder 1, %s13
    %p258 = scmp.lt.s32.totalorder %s13, 3
    %p259 = pnand %p257, %p258
    %p260 = pneg %p259
    // Predicated region
    $region45: #{basesnet_forward.1} parent=5 // pred_check
      _
    $region46: #{basesnet_forward.1} parent=5 // pred_check_branch
      %262 = sbr.rel (%p259) target = $region48
    $region47: #{basesnet_forward.1} parent=5 // pred_region
      %s263 = ssub.s32 %s13, 1
      %s264 = smul.u32 2, %s23
      %p265 = scmp.lt.s32.totalorder %s22, 1
      %s266 = scalar_select %p265, %s22, 1
      %p267 = scmp.lt.s32.totalorder %s264, 1
      %s268 = scalar_select %p267, %s264, 1
      %s269 = smul.addr %s266, 2
      %s270 = sadd.s32 %s268, %s269
      %s271 = smul.addr %s270, 4
      %s272 = scalar_lea.vmem %s0, %s271
      %p273 = pneg %p53
      %p274 = pneg %p50
      %p275 = pneg %p74
      %p276 = pneg %p71
      %p277 = pneg %p95
      %p278 = pneg %p92
      %p279 = pneg %p116
      %p280 = pneg %p113
      %p281 = pneg %p137
      %p282 = pneg %p134
      %p283 = pneg %p158
      %p284 = pneg %p155
      %p285 = pneg %p179
      %p286 = pneg %p176
      %p287 = pneg %p207
      %p288 = pneg %p204
      %s289 = smul.u32 2, %s23
      %p290 = scmp.lt.s32.totalorder %s22, 1
      %s291 = scalar_select %p290, %s22, 1
      %p292 = scmp.lt.s32.totalorder %s289, 1
      %s293 = scalar_select %p292, %s289, 1
      %s294 = smul.addr %s291, 8
      %s295 = sadd.s32 %s293, %s294
      %s296 = smul.addr %s295, 8
      %s297 = scalar_lea.vmem %s7, %s296
      %s298 = smul.u32 2, %s23
      %p299 = scmp.lt.s32.totalorder %s22, 1
      %s300 = scalar_select %p299, %s22, 1
      %p301 = scmp.lt.s32.totalorder %s298, 1
      %s302 = scalar_select %p301, %s298, 1
      %s303 = smul.addr %s300, 2
      %s304 = sadd.s32 %s302, %s303
      %s305 = smul.addr %s304, 4
      %s306 = scalar_lea.vmem %s0, %s305
      %s307 = smul.u32 2, %s23
      %s308 = smul.u32 2, %s23
      %p309 = scmp.lt.s32.totalorder %s22, 1
      %s310 = scalar_select %p309, %s22, 1
      %p311 = scmp.lt.s32.totalorder %s308, 1
      %s312 = scalar_select %p311, %s308, 1
      %s313 = smul.addr %s310, 8
      %s314 = sadd.s32 %s312, %s313
      %s315 = smul.addr %s314, 8
      %s316 = scalar_lea.vmem %s7, %s315
      %s317 = smul.u32 2, %s23
      %v319 = vld [vmem:[%s1] sm:$0xf]
      %v320 = vld [vmem:[%s1 + $0x4] sm:$0xf]
      %v321 = vld [vmem:[%s1 + $0x8] sm:$0xf]
      %v322 = vld [vmem:[%s1 + $0xc] sm:$0xf]
      %v323 = vld [vmem:[%s3] sm:$0xf]
      %v324 = vld [vmem:[%s3 + $0x4] sm:$0xf]
      %v325 = vld [vmem:[%s3 + $0x8] sm:$0xf]
      %v326 = vld [vmem:[%s3 + $0xc] sm:$0xf]
      %v327 = vld [vmem:[%s5] sm:$0xf]
      %v328 = vld [vmem:[%s5 + $0x4] sm:$0xf]
      %v329 = vld [vmem:[%s5 + $0x8] sm:$0xf]
      %v330 = vld [vmem:[%s5 + $0xc] sm:$0xf]
      %v331 = vld [vmem:[%s2] sm:$0xff]
      %v332 = vld [vmem:[%s2 + $0x8] sm:$0xff]
      %v333 = vld [vmem:[%s2 + $0x10] sm:$0xff]
      %v334 = vld [vmem:[%s2 + $0x18] sm:$0xff]
      %v335 = vld [vmem:[%s4] sm:$0xff]
      %v336 = vld [vmem:[%s4 + $0x8] sm:$0xff]
      %v337 = vld [vmem:[%s4 + $0x10] sm:$0xff]
      %v338 = vld [vmem:[%s4 + $0x18] sm:$0xff]
      %v339 = vld [vmem:[%s6] sm:$0xff]
      %v340 = vld [vmem:[%s6 + $0x8] sm:$0xff]
      %v341 = vld [vmem:[%s6 + $0x10] sm:$0xff]
      %v342 = vld [vmem:[%s6 + $0x18] sm:$0xff]
      %v343 = vld [vmem:[%s306] sm:$0xff]
      %345 = vst [vmem:[#allocation1] ss:$2 sm:$0xff] %v343
      %v346 = vld.sshfl [vmem:[#allocation1] sm:$0xff pattern:$0x75316420]
      %v347 = vld.sshfl [vmem:[#allocation1 + $0x8] sm:$0xff pattern:$0x75316420]
      %v350 = vpack.c.bf16 %v346, %v346
      %v351 = vpack.c.bf16 %v347, %v347
      %353 = vset.pattern.permute.xlu0 0
      %354 = vperm.xlu0 %353, %v331
      %v355 = vpop.permute.xlu0 %354
      %358 = vset.pattern.permute.xlu0 0
      %359 = vperm.xlu0 %358, %v332
      %v360 = vpop.permute.xlu0 %359
      %363 = vset.pattern.permute.xlu0 0
      %364 = vperm.xlu0 %363, %v333
      %v365 = vpop.permute.xlu0 %364
      %368 = vset.pattern.permute.xlu0 0
      %369 = vperm.xlu0 %368, %v334
      %v370 = vpop.permute.xlu0 %369
      %v376 = vunpack.c.l.b16 %v319
      %v377 = vunpack.c.l.b16 %v320
      %v378 = vunpack.c.l.b16 %v321
      %v379 = vunpack.c.l.b16 %v322
      %v380 = vpack.c.b16 %v377, %v376
      %v381 = vpack.c.b16 %v379, %v378
      %vm382 = vcmask 31744
      %v384 = vsel %vm382, %v380, 0
      %v387 = vsel %vm382, %v381, 0
      %vm389 = vcmask 1041408
      %v391 = vsel %vm389, %v350, 0
      %v394 = vsel %vm389, %v351, 0
      %396 = vmatpush.bf16.msra.mxu0 0
      %397 = vmatpush.bf16.msra.mxu0 0
      %398 = vmatpush.bf16.msra.mxu0 0
      %399 = vmatpush.bf16.msra.mxu0 0
      %400 = vmatpush.bf16.msra.mxu0 0
      %401 = vmatpush.bf16.msra.mxu0 0
      %402 = vmatpush.bf16.msra.mxu0 0
      %403 = vmatpush.bf16.msra.mxu0 %v391
      %404 = vmatmul.bf16.gmra.mxu0 %v384
      %v405 = vpop.f32.mrf.mxu0
      %v406 = vadd.f32 %v355, %v405
      %v407 = vpop.f32.mrf.mxu0
      %v408 = vadd.f32 %v360, %v407
      %409 = vmatmul.bf16.gmra.mxu0 %v387
      %v410 = vpop.f32.mrf.mxu0
      %v411 = vadd.f32 %v365, %v410
      %v412 = vpop.f32.mrf.mxu0
      %v413 = vadd.f32 %v370, %v412
      %414 = vdwg.mxu0
      %415 = vmatpush.bf16.msra.mxu0 0
      %416 = vmatpush.bf16.msra.mxu0 0
      %417 = vmatpush.bf16.msra.mxu0 0
      %418 = vmatpush.bf16.msra.mxu0 0
      %419 = vmatpush.bf16.msra.mxu0 0
      %420 = vmatpush.bf16.msra.mxu0 0
      %421 = vmatpush.bf16.msra.mxu0 0
      %422 = vmatpush.bf16.msra.mxu0 %v394
      %423 = vmatmul.bf16.gmra.mxu0 %v384
      %v424 = vpop.f32.mrf.mxu0
      %v425 = vadd.f32 %v355, %v424
      %v426 = vpop.f32.mrf.mxu0
      %v427 = vadd.f32 %v360, %v426
      %428 = vmatmul.bf16.gmra.mxu0 %v387
      %v429 = vpop.f32.mrf.mxu0
      %v430 = vadd.f32 %v365, %v429
      %v431 = vpop.f32.mrf.mxu0
      %v432 = vadd.f32 %v370, %v431
      %433 = vdwg.mxu0
      %v434 = vmax.f32 %v406, 0.0
      %v435 = vmax.f32 %v425, 0.0
      %v436 = vmax.f32 %v408, 0.0
      %v437 = vmax.f32 %v427, 0.0
      %v438 = vmax.f32 %v411, 0.0
      %v439 = vmax.f32 %v430, 0.0
      %v440 = vmax.f32 %v413, 0.0
      %v441 = vmax.f32 %v432, 0.0
      %v442 = vpack.c.bf16 %v436, %v434
      %v443 = vpack.c.bf16 %v437, %v435
      %v444 = vpack.c.bf16 %v440, %v438
      %v445 = vpack.c.bf16 %v441, %v439
      %447 = vset.pattern.permute.xlu0 0
      %448 = vperm.xlu0 %447, %v335
      %v449 = vpop.permute.xlu0 %448
      %452 = vset.pattern.permute.xlu0 0
      %453 = vperm.xlu0 %452, %v336
      %v454 = vpop.permute.xlu0 %453
      %457 = vset.pattern.permute.xlu0 0
      %458 = vperm.xlu0 %457, %v337
      %v459 = vpop.permute.xlu0 %458
      %462 = vset.pattern.permute.xlu0 0
      %463 = vperm.xlu0 %462, %v338
      %v464 = vpop.permute.xlu0 %463
      %v470 = vunpack.c.l.b16 %v323
      %v471 = vunpack.c.l.b16 %v324
      %v472 = vunpack.c.l.b16 %v325
      %v473 = vunpack.c.l.b16 %v326
      %v474 = vpack.c.b16 %v471, %v470
      %v475 = vpack.c.b16 %v473, %v472
      %vm476 = vcmask 261120
      %v478 = vsel %vm476, %v474, 0
      %v481 = vsel %vm476, %v475, 0
      %483 = vmatpush.bf16.msra.mxu0 0
      %484 = vmatpush.bf16.msra.mxu0 0
      %485 = vmatpush.bf16.msra.mxu0 0
      %486 = vmatpush.bf16.msra.mxu0 0
      %487 = vmatpush.bf16.msra.mxu0 0
      %488 = vmatpush.bf16.msra.mxu0 0
      %489 = vmatpush.bf16.msra.mxu0 %v444
      %490 = vmatpush.bf16.msra.mxu0 %v442
      %491 = vmatmul.bf16.gmra.mxu0 %v478
      %v492 = vpop.f32.mrf.mxu0
      %v493 = vadd.f32 %v449, %v492
      %v494 = vpop.f32.mrf.mxu0
      %v495 = vadd.f32 %v454, %v494
      %496 = vmatmul.bf16.gmra.mxu0 %v481
      %v497 = vpop.f32.mrf.mxu0
      %v498 = vadd.f32 %v459, %v497
      %v499 = vpop.f32.mrf.mxu0
      %v500 = vadd.f32 %v464, %v499
      %501 = vdwg.mxu0
      %502 = vmatpush.bf16.msra.mxu0 0
      %503 = vmatpush.bf16.msra.mxu0 0
      %504 = vmatpush.bf16.msra.mxu0 0
      %505 = vmatpush.bf16.msra.mxu0 0
      %506 = vmatpush.bf16.msra.mxu0 0
      %507 = vmatpush.bf16.msra.mxu0 0
      %508 = vmatpush.bf16.msra.mxu0 %v445
      %509 = vmatpush.bf16.msra.mxu0 %v443
      %510 = vmatmul.bf16.gmra.mxu0 %v478
      %v511 = vpop.f32.mrf.mxu0
      %v512 = vadd.f32 %v449, %v511
      %v513 = vpop.f32.mrf.mxu0
      %v514 = vadd.f32 %v454, %v513
      %515 = vmatmul.bf16.gmra.mxu0 %v481
      %v516 = vpop.f32.mrf.mxu0
      %v517 = vadd.f32 %v459, %v516
      %v518 = vpop.f32.mrf.mxu0
      %v519 = vadd.f32 %v464, %v518
      %520 = vdwg.mxu0
      %v521 = vmax.f32 %v493, 0.0
      %v522 = vmax.f32 %v512, 0.0
      %v523 = vmax.f32 %v495, 0.0
      %v524 = vmax.f32 %v514, 0.0
      %v525 = vmax.f32 %v498, 0.0
      %v526 = vmax.f32 %v517, 0.0
      %v527 = vmax.f32 %v500, 0.0
      %v528 = vmax.f32 %v519, 0.0
      %v529 = vpack.c.bf16 %v523, %v521
      %v530 = vpack.c.bf16 %v524, %v522
      %v531 = vpack.c.bf16 %v527, %v525
      %v532 = vpack.c.bf16 %v528, %v526
      %534 = vset.pattern.permute.xlu0 0
      %535 = vperm.xlu0 %534, %v339
      %v536 = vpop.permute.xlu0 %535
      %539 = vset.pattern.permute.xlu0 0
      %540 = vperm.xlu0 %539, %v340
      %v541 = vpop.permute.xlu0 %540
      %544 = vset.pattern.permute.xlu0 0
      %545 = vperm.xlu0 %544, %v341
      %v546 = vpop.permute.xlu0 %545
      %549 = vset.pattern.permute.xlu0 0
      %550 = vperm.xlu0 %549, %v342
      %v551 = vpop.permute.xlu0 %550
      %v557 = vunpack.c.l.b16 %v327
      %v558 = vunpack.c.l.b16 %v328
      %v559 = vunpack.c.l.b16 %v329
      %v560 = vunpack.c.l.b16 %v330
      %v561 = vpack.c.b16 %v558, %v557
      %v562 = vpack.c.b16 %v560, %v559
      %v564 = vsel %vm476, %v561, 0
      %v567 = vsel %vm476, %v562, 0
      %569 = vmatpush.bf16.msra.mxu0 0
      %570 = vmatpush.bf16.msra.mxu0 0
      %571 = vmatpush.bf16.msra.mxu0 0
      %572 = vmatpush.bf16.msra.mxu0 0
      %573 = vmatpush.bf16.msra.mxu0 0
      %574 = vmatpush.bf16.msra.mxu0 0
      %575 = vmatpush.bf16.msra.mxu0 %v531
      %576 = vmatpush.bf16.msra.mxu0 %v529
      %577 = vmatmul.bf16.gmra.mxu0 %v564
      %v578 = vpop.f32.mrf.mxu0
      %v579 = vadd.f32 %v536, %v578
      %v580 = vpop.f32.mrf.mxu0
      %v581 = vadd.f32 %v541, %v580
      %582 = vmatmul.bf16.gmra.mxu0 %v567
      %v583 = vpop.f32.mrf.mxu0
      %v584 = vadd.f32 %v546, %v583
      %v585 = vpop.f32.mrf.mxu0
      %v586 = vadd.f32 %v551, %v585
      %587 = vdwg.mxu0
      %588 = vmatpush.bf16.msra.mxu0 0
      %589 = vmatpush.bf16.msra.mxu0 0
      %590 = vmatpush.bf16.msra.mxu0 0
      %591 = vmatpush.bf16.msra.mxu0 0
      %592 = vmatpush.bf16.msra.mxu0 0
      %593 = vmatpush.bf16.msra.mxu0 0
      %594 = vmatpush.bf16.msra.mxu0 %v532
      %595 = vmatpush.bf16.msra.mxu0 %v530
      %596 = vmatmul.bf16.gmra.mxu0 %v564
      %v597 = vpop.f32.mrf.mxu0
      %v598 = vadd.f32 %v536, %v597
      %v599 = vpop.f32.mrf.mxu0
      %v600 = vadd.f32 %v541, %v599
      %601 = vmatmul.bf16.gmra.mxu0 %v567
      %v602 = vpop.f32.mrf.mxu0
      %v603 = vadd.f32 %v546, %v602
      %v604 = vpop.f32.mrf.mxu0
      %v605 = vadd.f32 %v551, %v604
      %606 = vdwg.mxu0
      %v607 = vmax.f32 %v579, 0.0
      %v608 = vmax.f32 %v598, 0.0
      %v609 = vmax.f32 %v581, 0.0
      %v610 = vmax.f32 %v600, 0.0
      %v611 = vmax.f32 %v584, 0.0
      %v612 = vmax.f32 %v603, 0.0
      %v613 = vmax.f32 %v586, 0.0
      %v614 = vmax.f32 %v605, 0.0
      %615 = vst [vmem:[%s316] sm:$0xff] %v607
      %616 = vst [vmem:[%s316 + $0x8] sm:$0xff] %v608
      %617 = vst [vmem:[%s316 + $0x10] sm:$0xff] %v609
      %618 = vst [vmem:[%s316 + $0x18] sm:$0xff] %v610
      %619 = vst [vmem:[%s316 + $0x20] sm:$0xff] %v611
      %620 = vst [vmem:[%s316 + $0x28] sm:$0xff] %v612
      %621 = vst [vmem:[%s316 + $0x30] sm:$0xff] %v613
      %622 = vst [vmem:[%s316 + $0x38] sm:$0xff] %v614
      %s623 = smul.u32 2, %s23
      %p624 = scmp.lt.s32.totalorder %s22, 1
      %s625 = scalar_select %p624, %s22, 1
      %p626 = scmp.lt.s32.totalorder %s623, 1
      %s627 = scalar_select %p626, %s623, 1
      %s628 = smul.addr %s625, 8
      %s629 = sadd.s32 %s627, %s628
      %s630 = smul.addr %s629, 8
      %s631 = scalar_lea.vmem %s7, %s630
      // Predicated region
      $region49: #{basesnet_forward.1} parent=47 // pred_check
        %p632 = pneg %p204
      $region50: #{basesnet_forward.1} parent=47 // pred_check_branch
        %634 = sbr.rel (%p632) target = $region52
      $region51: #{basesnet_forward.1} parent=47 // pred_region
        %s635 = smul.u32 2, %s23
      $region52: #{basesnet_forward.1} parent=47 // pred_fallthru
        _
    $region48: #{basesnet_forward.1} parent=5 // pred_fallthru
      _
    %p636 = scmp.le.s32.totalorder 2, %s13
    // Predicated region
    $region53: #{basesnet_forward.1} parent=5 // pred_check
      %p637 = pneg %p636
    $region54: #{basesnet_forward.1} parent=5 // pred_check_branch
      %639 = sbr.rel (%p637) target = $region56
    $region55: #{basesnet_forward.1} parent=5 // pred_region
      %s640 = ssub.s32 %s13, 2
      // Predicated region
      $region57: #{basesnet_forward.1} parent=55 // pred_check
        %p641 = pneg %p210
      $region58: #{basesnet_forward.1} parent=55 // pred_check_branch
        %643 = sbr.rel (%p641) target = $region60
      $region59: #{basesnet_forward.1} parent=55 // pred_region
        %s644 = smul.u32 2, %s25
        %p645 = scmp.lt.s32.totalorder %s24, 1
        %s646 = scalar_select %p645, %s24, 1
        %p647 = scmp.lt.s32.totalorder %s644, 1
        %s648 = scalar_select %p647, %s644, 1
        %s649 = smul.addr %s646, 8
        %s650 = sadd.s32 %s648, %s649
        %s651 = smul.addr %s650, 8
        %s652 = scalar_lea.vmem %s7, %s651
      $region60: #{basesnet_forward.1} parent=55 // pred_fallthru
        _
    $region56: #{basesnet_forward.1} parent=5 // pred_fallthru
      _
  $region6: #{basesnet_forward.1} parent=0 // loop_footer
    %s17 = sadd.s32 1, %s13
  $region7: #{basesnet_forward.1} parent=0 // loop_footer_branch
    %12 = sbr.rel target = $region3
  $region8: #{basesnet_forward.1} parent=0 // loop_exit
    _

</llo_original>
